<compile_context>
chip_gen: v5e
topology: v5e:2x2
jax: 0.10.0
libtpu: 0.0.40
codegen_flags: <defaults>
</compile_context>

<pallas_src>
import functools

import jax
import jax.numpy as jnp
from jax.experimental import pallas as pl
from jax.experimental.pallas import tpu as pltpu

IN_FEAT = 310
HEAD_WIDTH = 128           # fused-head / output-slab lane width
ADV1_LO, ADV1_HI = 32, 64  # lanes of the fused head holding ad_layer1's 32 outputs


def _leaky_relu(z, negative_slope=0.01):
    return jnp.where(z > 0, z, negative_slope * z)


def dann_kernel(
    x_ref,                      # (TB, 310) f32  (cast to bf16 in VMEM)
    w1_ref, b1_ref,             # (310, 256) bf16 , (1, 256) f32
    w2_ref, b2_ref,             # (256, 128) bf16 , (1, 128) f32
    w3_ref, b3_ref,             # (128,  64) bf16 , (1,  64) f32
    wf_ref, bf_ref,             # fused [cls_fc | ad_layer1]: (64, 128) bf16 , (1, 128) f32
    a2w_ref, a2b_ref,           # (128, 32) bf16 (rows 32:64 = ad_layer2, rest 0), (1, 32) f32
    a3w_ref, a3b_ref,           # (1, 32) f32 row , (1, 1) f32
    out_ref,                    # (TB, 128) bf16 output slab
    *, num_cat,
):
    bf16, f32 = jnp.bfloat16, jnp.float32
    x = x_ref[...].astype(bf16)            # in-VMEM cast; HBM only ever sees the raw f32 x

    # ---- shared feature extractor (CFE); elementwise math stays f32 (v5e-safe) ----
    h = _leaky_relu(jnp.dot(x, w1_ref[...], preferred_element_type=f32) + b1_ref[...])
    h = _leaky_relu(jnp.dot(h.astype(bf16), w2_ref[...], preferred_element_type=f32) + b2_ref[...])
    feat = _leaky_relu(jnp.dot(h.astype(bf16), w3_ref[...], preferred_element_type=f32) + b3_ref[...])

    # ---- fused head: one (TB,64)x(64,128) matmul computes cls_fc AND ad_layer1 ----
    hf = jnp.dot(feat.astype(bf16), wf_ref[...], preferred_element_type=f32) + bf_ref[...]
    # lanes [0:num_cat]   -> class logits (clabel)
    # lanes [32:64]       -> ad_layer1 pre-activation
    # all other lanes     -> exactly 0

    # ---- domain head (AdversarialLayer.apply + Dropout(eval) are identity) ----
    d1 = _leaky_relu(hf)                                   # clabel lanes killed by zero rows of a2w
    d2 = jnp.dot(d1.astype(bf16), a2w_ref[...], preferred_element_type=f32) + a2b_ref[...]
    d2 = _leaky_relu(d2)
    # N=1 final layer: VPU multiply + lane reduction instead of a 1-column MXU matmul
    dl = jnp.sum(d2 * a3w_ref[...], axis=-1, keepdims=True) + a3b_ref[...]
    dl = jax.nn.sigmoid(dl)                                # (TB, 1)

    # ---- assemble lane-dense output slab (single unmasked 128-lane bf16 store) ----
    lane = jax.lax.broadcasted_iota(jnp.int32, hf.shape, 1)
    out = jnp.where(lane < num_cat, hf, 0.0)               # clabel in lanes [0:num_cat]
    out = jnp.where(lane == num_cat, dl, out)              # dlabel in lane num_cat
    out_ref[...] = out.astype(out_ref.dtype)


def prepare_kernel_params(p, num_cat):
    """One-time fuse/cast of the torch-layout f32 params for the kernel (hoist out of
    the per-call path and reuse the returned dict across forwards)."""
    f32, bf16 = jnp.float32, jnp.bfloat16

    # fused head weight/bias: columns [0:num_cat] = cls_fc, columns [32:64] = ad_layer1
    wf = jnp.zeros((64, HEAD_WIDTH), f32)
    wf = wf.at[:, :num_cat].set(p["wc"]).at[:, ADV1_LO:ADV1_HI].set(p["a1w"]).astype(bf16)
    bfb = jnp.zeros((1, HEAD_WIDTH), f32)
    bfb = bfb.at[:, :num_cat].set(p["bc"]).at[:, ADV1_LO:ADV1_HI].set(p["a1b"])

    # ad_layer2 weight padded to K=128 so it consumes the fused-head lanes directly
    a2w = jnp.zeros((HEAD_WIDTH, 32), f32).at[ADV1_LO:ADV1_HI].set(p["a2w"]).astype(bf16)

    return dict(
        w1=p["w1"].astype(bf16), b1=p["b1"],
        w2=p["w2"].astype(bf16), b2=p["b2"],
        w3=p["w3"].astype(bf16), b3=p["b3"],
        wf=wf, bf=bfb,
        a2w=a2w, a2b=p["a2b"],
        a3w=p["a3w"].reshape(1, 32).astype(f32),   # row vector for the VPU+XLU reduction
        a3b=p["a3b"],
    )


def _pick_batch_tile(batch):
    """Generation-matched batch tile (multiple of 16)."""
    try:
        kind = jax.devices()[0].device_kind.lower()
    except Exception:
        kind = ""
    tb_max = 512 if "v5" in kind else 1024
    # v7x has 2 TensorCores per chip: keep >= 2 grid steps so the "parallel"
    # batch axis actually shards across both cores.
    min_steps = 2 if ("v7" in kind or "tpu7" in kind) else 1
    tb = pl.cdiv(pl.cdiv(batch, min_steps), 16) * 16
    return max(16, min(tb_max, tb))


@functools.partial(jax.jit, static_argnames=("number_of_category",))
def dann_forward(x, kernel_params, number_of_category=4):
    assert x.ndim == 2 and x.shape[1] == IN_FEAT
    # dlabel occupies lane `number_of_category`, which must stay below the ad_layer1
    # lanes [32:64] of the fused head -> keep num_cat strictly below ADV1_LO.
    assert 0 < number_of_category < ADV1_LO
    B = x.shape[0]
    kp = kernel_params

    TB = _pick_batch_tile(B)
    grid = (pl.cdiv(B, TB),)   # partial edge block allowed: OOB rows are dropped/ignored

    weights = (kp["w1"], kp["b1"], kp["w2"], kp["b2"], kp["w3"], kp["b3"],
               kp["wf"], kp["bf"], kp["a2w"], kp["a2b"], kp["a3w"], kp["a3b"])

    in_specs = [pl.BlockSpec((TB, IN_FEAT), lambda i: (i, 0))]
    # weights/biases: full-array blocks, constant index_map -> stay VMEM-resident
    in_specs += [pl.BlockSpec(w.shape, lambda i: (0, 0)) for w in weights]

    flops = int(2 * B * (IN_FEAT * 256 + 256 * 128 + 128 * 64
                         + 64 * HEAD_WIDTH + HEAD_WIDTH * 32 + 32))
    bytes_accessed = int(x.size * x.dtype.itemsize
                         + sum(int(w.size) * w.dtype.itemsize for w in weights)
                         + B * HEAD_WIDTH * 2)

    out = pl.pallas_call(
        functools.partial(dann_kernel, num_cat=number_of_category),
        out_shape=jax.ShapeDtypeStruct((B, HEAD_WIDTH), jnp.bfloat16),
        grid=grid,
        in_specs=in_specs,
        out_specs=pl.BlockSpec((TB, HEAD_WIDTH), lambda i: (i, 0)),
        compiler_params=pltpu.CompilerParams(dimension_semantics=("parallel",)),
        cost_estimate=pl.CostEstimate(flops=flops, transcendentals=int(B),
                                      bytes_accessed=bytes_accessed),
    )(x, *weights)

    clabel = out[:, :number_of_category].astype(jnp.float32)
    dlabel = out[:, number_of_category:number_of_category + 1].astype(jnp.float32)
    return clabel, dlabel


def init_params(key, number_of_category=4):
    """Torch-layout (transposed to (in, out)) f32 params mirroring the PyTorch module."""
    ks = jax.random.split(key, 16)

    def linear(kw, kb, fan_in, fan_out):
        bound = 1.0 / jnp.sqrt(float(fan_in))
        w = jax.random.uniform(kw, (fan_in, fan_out), jnp.float32, -bound, bound)
        b = jax.random.uniform(kb, (1, fan_out), jnp.float32, -bound, bound)
        return w, b

    w1, b1 = linear(ks[0], ks[1], IN_FEAT, 256)
    w2, b2 = linear(ks[2], ks[3], 256, 128)
    w3, b3 = linear(ks[4], ks[5], 128, 64)
    wc, bc = linear(ks[6], ks[7], 64, number_of_category)

    # AdversarialNetwork: weight.data.normal_(0, sigma), bias = 0
    a1w = 0.01 * jax.random.normal(ks[8], (64, 32), jnp.float32)
    a1b = jnp.zeros((1, 32), jnp.float32)
    a2w = 0.01 * jax.random.normal(ks[9], (32, 32), jnp.float32)
    a2b = jnp.zeros((1, 32), jnp.float32)
    a3w = 0.3 * jax.random.normal(ks[10], (32, 1), jnp.float32)
    a3b = jnp.zeros((1, 1), jnp.float32)

    return dict(
        w1=w1, b1=b1, w2=w2, b2=b2, w3=w3, b3=b3,
        wc=wc, bc=bc,
        a1w=a1w, a1b=a1b, a2w=a2w, a2b=a2b, a3w=a3w, a3b=a3b,
    )


def reference_forward(x, p):
    def leaky(z):
        return jnp.where(z > 0, z, 0.01 * z)
    h = leaky(x @ p["w1"] + p["b1"])
    h = leaky(h @ p["w2"] + p["b2"])
    f = leaky(h @ p["w3"] + p["b3"])
    c = f @ p["wc"] + p["bc"]
    d = leaky(f @ p["a1w"] + p["a1b"])
    d = leaky(d @ p["a2w"] + p["a2b"])
    d = jax.nn.sigmoid(d @ p["a3w"] + p["a3b"])
    return c, d


if __name__ == "__main__":
    key = jax.random.PRNGKey(0)
    kx, kparam = jax.random.split(key)

    B, NUM_CAT = 8, 4
    x = jax.random.normal(kx, (B, IN_FEAT), jnp.float32)
    params = init_params(kparam, number_of_category=NUM_CAT)

    # one-time weight prep (fuse / cast), reused across forwards
    kernel_params = prepare_kernel_params(params, NUM_CAT)

    clabel, dlabel = dann_forward(x, kernel_params, number_of_category=NUM_CAT)
    jax.block_until_ready((clabel, dlabel))

    # sanity check against pure-JAX f32 reference (bf16 weights/acts/output -> looser tol)
    c_ref, d_ref = reference_forward(x, params)
    assert clabel.shape == (B, NUM_CAT) and dlabel.shape == (B, 1)
    assert jnp.allclose(clabel, c_ref, atol=3e-2, rtol=3e-2)
    assert jnp.allclose(dlabel, d_ref, atol=3e-2, rtol=3e-2)

    print("KERNEL_OK")
</pallas_src>

<mosaic_0001>
module attributes {stable_mosaic.version = 11 : i64} {
  func.func @dann_kernel(%arg0: i32, %arg1: memref<16x310xf32, #tpu.memory_space<vmem>>, %arg2: memref<310x256xbf16, #tpu.memory_space<vmem>>, %arg3: memref<1x256xf32, #tpu.memory_space<vmem>>, %arg4: memref<256x128xbf16, #tpu.memory_space<vmem>>, %arg5: memref<1x128xf32, #tpu.memory_space<vmem>>, %arg6: memref<128x64xbf16, #tpu.memory_space<vmem>>, %arg7: memref<1x64xf32, #tpu.memory_space<vmem>>, %arg8: memref<64x128xbf16, #tpu.memory_space<vmem>>, %arg9: memref<1x128xf32, #tpu.memory_space<vmem>>, %arg10: memref<128x32xbf16, #tpu.memory_space<vmem>>, %arg11: memref<1x32xf32, #tpu.memory_space<vmem>>, %arg12: memref<1x32xf32, #tpu.memory_space<vmem>>, %arg13: memref<1x1xf32, #tpu.memory_space<vmem>>, %arg14: memref<16x128xbf16, #tpu.memory_space<vmem>>) attributes {dimension_semantics = [#tpu.dimension_semantics<parallel>], iteration_bounds = array<i64: 1>, scalar_prefetch = 0 : i64, scratch_operands = 0 : i64, tpu.core_type = #tpu.core_type<tc>, window_params = [{transform_indices = @transform_0, window_bounds = array<i64: 16, 310>}, {pipeline_mode = #tpu.pipeline_mode<synchronous>, transform_indices = @transform_1, window_bounds = array<i64: 310, 256>}, {pipeline_mode = #tpu.pipeline_mode<synchronous>, transform_indices = @transform_2, window_bounds = array<i64: 1, 256>}, {pipeline_mode = #tpu.pipeline_mode<synchronous>, transform_indices = @transform_3, window_bounds = array<i64: 256, 128>}, {pipeline_mode = #tpu.pipeline_mode<synchronous>, transform_indices = @transform_4, window_bounds = array<i64: 1, 128>}, {pipeline_mode = #tpu.pipeline_mode<synchronous>, transform_indices = @transform_5, window_bounds = array<i64: 128, 64>}, {pipeline_mode = #tpu.pipeline_mode<synchronous>, transform_indices = @transform_6, window_bounds = array<i64: 1, 64>}, {pipeline_mode = #tpu.pipeline_mode<synchronous>, transform_indices = @transform_7, window_bounds = array<i64: 64, 128>}, {pipeline_mode = #tpu.pipeline_mode<synchronous>, transform_indices = @transform_8, window_bounds = array<i64: 1, 128>}, {pipeline_mode = #tpu.pipeline_mode<synchronous>, transform_indices = @transform_9, window_bounds = array<i64: 128, 32>}, {pipeline_mode = #tpu.pipeline_mode<synchronous>, transform_indices = @transform_10, window_bounds = array<i64: 1, 32>}, {pipeline_mode = #tpu.pipeline_mode<synchronous>, transform_indices = @transform_11, window_bounds = array<i64: 1, 32>}, {pipeline_mode = #tpu.pipeline_mode<synchronous>, transform_indices = @transform_12, window_bounds = array<i64: 1, 1>}, {transform_indices = @transform_13, window_bounds = array<i64: 16, 128>}]} {
    %c0 = arith.constant 0 : index
    %c0_0 = arith.constant 0 : index
    %0 = vector.load %arg1[%c0, %c0_0] : memref<16x310xf32, #tpu.memory_space<vmem>>, vector<16x310xf32>
    %1 = arith.truncf %0 : vector<16x310xf32> to vector<16x310xbf16>
    %c0_1 = arith.constant 0 : index
    %c0_2 = arith.constant 0 : index
    %2 = vector.load %arg2[%c0_1, %c0_2] : memref<310x256xbf16, #tpu.memory_space<vmem>>, vector<310x256xbf16>
    %cst = arith.constant dense<0.000000e+00> : vector<16x256xf32>
    %3 = tpu.matmul %1, %2, %cst {dimension_numbers = #tpu.dot_dimension_numbers<[1], [0], [0], [1], [0, 0, 1, 1], [], []>} : vector<16x310xbf16>, vector<310x256xbf16>, vector<16x256xf32> -> vector<16x256xf32>
    %c0_3 = arith.constant 0 : index
    %c0_4 = arith.constant 0 : index
    %4 = vector.load %arg3[%c0_3, %c0_4] : memref<1x256xf32, #tpu.memory_space<vmem>>, vector<1x256xf32>
    %5 = vector.broadcast %4 : vector<1x256xf32> to vector<16x256xf32>
    %6 = arith.addf %3, %5 : vector<16x256xf32>
    %cst_5 = arith.constant 0.000000e+00 : f32
    %7 = vector.broadcast %cst_5 : f32 to vector<16x256xf32>
    %8 = arith.cmpf ogt, %6, %7 : vector<16x256xf32>
    %cst_6 = arith.constant 0.00999999977 : f32
    %9 = vector.broadcast %cst_6 : f32 to vector<16x256xf32>
    %10 = arith.mulf %9, %6 : vector<16x256xf32>
    %11 = arith.select %8, %6, %10 : vector<16x256xi1>, vector<16x256xf32>
    %12 = arith.truncf %11 : vector<16x256xf32> to vector<16x256xbf16>
    %c0_7 = arith.constant 0 : index
    %c0_8 = arith.constant 0 : index
    %13 = vector.load %arg4[%c0_7, %c0_8] : memref<256x128xbf16, #tpu.memory_space<vmem>>, vector<256x128xbf16>
    %cst_9 = arith.constant dense<0.000000e+00> : vector<16x128xf32>
    %14 = tpu.matmul %12, %13, %cst_9 {dimension_numbers = #tpu.dot_dimension_numbers<[1], [0], [0], [1], [0, 0, 1, 1], [], []>} : vector<16x256xbf16>, vector<256x128xbf16>, vector<16x128xf32> -> vector<16x128xf32>
    %c0_10 = arith.constant 0 : index
    %c0_11 = arith.constant 0 : index
    %15 = vector.load %arg5[%c0_10, %c0_11] : memref<1x128xf32, #tpu.memory_space<vmem>>, vector<1x128xf32>
    %16 = vector.broadcast %15 : vector<1x128xf32> to vector<16x128xf32>
    %17 = arith.addf %14, %16 : vector<16x128xf32>
    %cst_12 = arith.constant 0.000000e+00 : f32
    %18 = vector.broadcast %cst_12 : f32 to vector<16x128xf32>
    %19 = arith.cmpf ogt, %17, %18 : vector<16x128xf32>
    %cst_13 = arith.constant 0.00999999977 : f32
    %20 = vector.broadcast %cst_13 : f32 to vector<16x128xf32>
    %21 = arith.mulf %20, %17 : vector<16x128xf32>
    %22 = arith.select %19, %17, %21 : vector<16x128xi1>, vector<16x128xf32>
    %23 = arith.truncf %22 : vector<16x128xf32> to vector<16x128xbf16>
    %c0_14 = arith.constant 0 : index
    %c0_15 = arith.constant 0 : index
    %24 = vector.load %arg6[%c0_14, %c0_15] : memref<128x64xbf16, #tpu.memory_space<vmem>>, vector<128x64xbf16>
    %cst_16 = arith.constant dense<0.000000e+00> : vector<16x64xf32>
    %25 = tpu.matmul %23, %24, %cst_16 {dimension_numbers = #tpu.dot_dimension_numbers<[1], [0], [0], [1], [0, 0, 1, 1], [], []>} : vector<16x128xbf16>, vector<128x64xbf16>, vector<16x64xf32> -> vector<16x64xf32>
    %c0_17 = arith.constant 0 : index
    %c0_18 = arith.constant 0 : index
    %26 = vector.load %arg7[%c0_17, %c0_18] : memref<1x64xf32, #tpu.memory_space<vmem>>, vector<1x64xf32>
    %27 = vector.broadcast %26 : vector<1x64xf32> to vector<16x64xf32>
    %28 = arith.addf %25, %27 : vector<16x64xf32>
    %cst_19 = arith.constant 0.000000e+00 : f32
    %29 = vector.broadcast %cst_19 : f32 to vector<16x64xf32>
    %30 = arith.cmpf ogt, %28, %29 : vector<16x64xf32>
    %cst_20 = arith.constant 0.00999999977 : f32
    %31 = vector.broadcast %cst_20 : f32 to vector<16x64xf32>
    %32 = arith.mulf %31, %28 : vector<16x64xf32>
    %33 = arith.select %30, %28, %32 : vector<16x64xi1>, vector<16x64xf32>
    %34 = arith.truncf %33 : vector<16x64xf32> to vector<16x64xbf16>
    %c0_21 = arith.constant 0 : index
    %c0_22 = arith.constant 0 : index
    %35 = vector.load %arg8[%c0_21, %c0_22] : memref<64x128xbf16, #tpu.memory_space<vmem>>, vector<64x128xbf16>
    %cst_23 = arith.constant dense<0.000000e+00> : vector<16x128xf32>
    %36 = tpu.matmul %34, %35, %cst_23 {dimension_numbers = #tpu.dot_dimension_numbers<[1], [0], [0], [1], [0, 0, 1, 1], [], []>} : vector<16x64xbf16>, vector<64x128xbf16>, vector<16x128xf32> -> vector<16x128xf32>
    %c0_24 = arith.constant 0 : index
    %c0_25 = arith.constant 0 : index
    %37 = vector.load %arg9[%c0_24, %c0_25] : memref<1x128xf32, #tpu.memory_space<vmem>>, vector<1x128xf32>
    %38 = vector.broadcast %37 : vector<1x128xf32> to vector<16x128xf32>
    %39 = arith.addf %36, %38 : vector<16x128xf32>
    %cst_26 = arith.constant 0.000000e+00 : f32
    %40 = vector.broadcast %cst_26 : f32 to vector<16x128xf32>
    %41 = arith.cmpf ogt, %39, %40 : vector<16x128xf32>
    %cst_27 = arith.constant 0.00999999977 : f32
    %42 = vector.broadcast %cst_27 : f32 to vector<16x128xf32>
    %43 = arith.mulf %42, %39 : vector<16x128xf32>
    %44 = arith.select %41, %39, %43 : vector<16x128xi1>, vector<16x128xf32>
    %45 = arith.truncf %44 : vector<16x128xf32> to vector<16x128xbf16>
    %c0_28 = arith.constant 0 : index
    %c0_29 = arith.constant 0 : index
    %46 = vector.load %arg10[%c0_28, %c0_29] : memref<128x32xbf16, #tpu.memory_space<vmem>>, vector<128x32xbf16>
    %cst_30 = arith.constant dense<0.000000e+00> : vector<16x32xf32>
    %47 = tpu.matmul %45, %46, %cst_30 {dimension_numbers = #tpu.dot_dimension_numbers<[1], [0], [0], [1], [0, 0, 1, 1], [], []>} : vector<16x128xbf16>, vector<128x32xbf16>, vector<16x32xf32> -> vector<16x32xf32>
    %c0_31 = arith.constant 0 : index
    %c0_32 = arith.constant 0 : index
    %48 = vector.load %arg11[%c0_31, %c0_32] : memref<1x32xf32, #tpu.memory_space<vmem>>, vector<1x32xf32>
    %49 = vector.broadcast %48 : vector<1x32xf32> to vector<16x32xf32>
    %50 = arith.addf %47, %49 : vector<16x32xf32>
    %cst_33 = arith.constant 0.000000e+00 : f32
    %51 = vector.broadcast %cst_33 : f32 to vector<16x32xf32>
    %52 = arith.cmpf ogt, %50, %51 : vector<16x32xf32>
    %cst_34 = arith.constant 0.00999999977 : f32
    %53 = vector.broadcast %cst_34 : f32 to vector<16x32xf32>
    %54 = arith.mulf %53, %50 : vector<16x32xf32>
    %55 = arith.select %52, %50, %54 : vector<16x32xi1>, vector<16x32xf32>
    %c0_35 = arith.constant 0 : index
    %c0_36 = arith.constant 0 : index
    %56 = vector.load %arg12[%c0_35, %c0_36] : memref<1x32xf32, #tpu.memory_space<vmem>>, vector<1x32xf32>
    %57 = vector.broadcast %56 : vector<1x32xf32> to vector<16x32xf32>
    %58 = arith.mulf %55, %57 : vector<16x32xf32>
    %cst_37 = arith.constant dense<0.000000e+00> : vector<16xf32>
    %59 = vector.multi_reduction <add>, %58, %cst_37 [1] : vector<16x32xf32> to vector<16xf32>
    %60 = vector.shape_cast %59 : vector<16xf32> to vector<16x1xf32>
    %c0_38 = arith.constant 0 : index
    %c0_39 = arith.constant 0 : index
    %61 = vector.load %arg13[%c0_38, %c0_39] : memref<1x1xf32, #tpu.memory_space<vmem>>, vector<1x1xf32>
    %62 = vector.broadcast %61 : vector<1x1xf32> to vector<16x1xf32>
    %63 = arith.addf %60, %62 : vector<16x1xf32>
    %64 = arith.negf %63 : vector<16x1xf32>
    %65 = math.exp %64 : vector<16x1xf32>
    %cst_40 = arith.constant 1.000000e+00 : f32
    %66 = vector.broadcast %cst_40 : f32 to vector<16x1xf32>
    %67 = arith.addf %66, %65 : vector<16x1xf32>
    %68 = arith.divf %66, %67 : vector<16x1xf32>
    %69 = tpu.iota {dimensions = array<i32: 1>} : vector<16x128xi32>
    %c4_i32 = arith.constant 4 : i32
    %70 = vector.broadcast %c4_i32 : i32 to vector<16x128xi32>
    %71 = arith.cmpi slt, %69, %70 : vector<16x128xi32>
    %cst_41 = arith.constant 0.000000e+00 : f32
    %72 = vector.broadcast %cst_41 : f32 to vector<16x128xf32>
    %73 = arith.select %71, %39, %72 : vector<16x128xi1>, vector<16x128xf32>
    %c4_i32_42 = arith.constant 4 : i32
    %74 = vector.broadcast %c4_i32_42 : i32 to vector<16x128xi32>
    %75 = arith.cmpi eq, %69, %74 : vector<16x128xi32>
    %76 = vector.shape_cast %68 : vector<16x1xf32> to vector<16x1xf32>
    %77 = vector.broadcast %76 : vector<16x1xf32> to vector<16x128xf32>
    %78 = arith.select %75, %77, %73 : vector<16x128xi1>, vector<16x128xf32>
    %79 = arith.truncf %78 : vector<16x128xf32> to vector<16x128xbf16>
    %c0_43 = arith.constant 0 : index
    %c0_44 = arith.constant 0 : index
    %80 = vector.load %arg14[%c0_43, %c0_44] : memref<16x128xbf16, #tpu.memory_space<vmem>>, vector<16x128xbf16>
    tpu.vector_store %arg14[%c0_43, %c0_44], %79 {strides = array<i32>} : memref<16x128xbf16, #tpu.memory_space<vmem>>, vector<16x128xbf16>,
    return
  }
  func.func @transform_0(%arg0: i32) -> (i32, i32) {
    %c0_i32 = arith.constant 0 : i32
    %c0_i32_0 = arith.constant 0 : i32
    return %arg0, %c0_i32 : i32, i32
  }
  func.func @transform_1(%arg0: i32) -> (i32, i32) {
    %c0_i32 = arith.constant 0 : i32
    %c0_i32_0 = arith.constant 0 : i32
    %c0_i32_1 = arith.constant 0 : i32
    return %c0_i32, %c0_i32_0 : i32, i32
  }
  func.func @transform_2(%arg0: i32) -> (i32, i32) {
    %c0_i32 = arith.constant 0 : i32
    %c0_i32_0 = arith.constant 0 : i32
    %c0_i32_1 = arith.constant 0 : i32
    return %c0_i32, %c0_i32_0 : i32, i32
  }
  func.func @transform_3(%arg0: i32) -> (i32, i32) {
    %c0_i32 = arith.constant 0 : i32
    %c0_i32_0 = arith.constant 0 : i32
    %c0_i32_1 = arith.constant 0 : i32
    return %c0_i32, %c0_i32_0 : i32, i32
  }
  func.func @transform_4(%arg0: i32) -> (i32, i32) {
    %c0_i32 = arith.constant 0 : i32
    %c0_i32_0 = arith.constant 0 : i32
    %c0_i32_1 = arith.constant 0 : i32
    return %c0_i32, %c0_i32_0 : i32, i32
  }
  func.func @transform_5(%arg0: i32) -> (i32, i32) {
    %c0_i32 = arith.constant 0 : i32
    %c0_i32_0 = arith.constant 0 : i32
    %c0_i32_1 = arith.constant 0 : i32
    return %c0_i32, %c0_i32_0 : i32, i32
  }
  func.func @transform_6(%arg0: i32) -> (i32, i32) {
    %c0_i32 = arith.constant 0 : i32
    %c0_i32_0 = arith.constant 0 : i32
    %c0_i32_1 = arith.constant 0 : i32
    return %c0_i32, %c0_i32_0 : i32, i32
  }
  func.func @transform_7(%arg0: i32) -> (i32, i32) {
    %c0_i32 = arith.constant 0 : i32
    %c0_i32_0 = arith.constant 0 : i32
    %c0_i32_1 = arith.constant 0 : i32
    return %c0_i32, %c0_i32_0 : i32, i32
  }
  func.func @transform_8(%arg0: i32) -> (i32, i32) {
    %c0_i32 = arith.constant 0 : i32
    %c0_i32_0 = arith.constant 0 : i32
    %c0_i32_1 = arith.constant 0 : i32
    return %c0_i32, %c0_i32_0 : i32, i32
  }
  func.func @transform_9(%arg0: i32) -> (i32, i32) {
    %c0_i32 = arith.constant 0 : i32
    %c0_i32_0 = arith.constant 0 : i32
    %c0_i32_1 = arith.constant 0 : i32
    return %c0_i32, %c0_i32_0 : i32, i32
  }
  func.func @transform_10(%arg0: i32) -> (i32, i32) {
    %c0_i32 = arith.constant 0 : i32
    %c0_i32_0 = arith.constant 0 : i32
    %c0_i32_1 = arith.constant 0 : i32
    return %c0_i32, %c0_i32_0 : i32, i32
  }
  func.func @transform_11(%arg0: i32) -> (i32, i32) {
    %c0_i32 = arith.constant 0 : i32
    %c0_i32_0 = arith.constant 0 : i32
    %c0_i32_1 = arith.constant 0 : i32
    return %c0_i32, %c0_i32_0 : i32, i32
  }
  func.func @transform_12(%arg0: i32) -> (i32, i32) {
    %c0_i32 = arith.constant 0 : i32
    %c0_i32_0 = arith.constant 0 : i32
    %c0_i32_1 = arith.constant 0 : i32
    return %c0_i32, %c0_i32_0 : i32, i32
  }
  func.func @transform_13(%arg0: i32) -> (i32, i32) {
    %c0_i32 = arith.constant 0 : i32
    %c0_i32_0 = arith.constant 0 : i32
    return %arg0, %c0_i32 : i32, i32
  }
}

</mosaic_0001>

<llo_original>
// kernel: dann_forward.1
$region0: #{dann_forward.1}
  #allocation0 [shape = 'u32[]', space=smem, size = 0x4, offset = 0x4, fixed_abs, tag = 'smem constant byte address 0x4 - core index']
  #allocation1 [shape = 'u32[72,128]{1,0:T(1,128)}', space=vmem, size = 0x9000, scoped, tag = 'internal scratch']
  #allocation2 [shape = 'f32[1,1]{1,0:T(1,128)S(1)}', space=vmem, size = 0x200, scoped, tag = 'scoped memory for dann_forward.1']
  %s0 = inlined_call_operand.vmem [shape: f32[8,310], index: 0, kind: input, shape index: {}]
  %s1 = inlined_call_operand.hbm [shape: bf16[310,256], index: 1, kind: input, shape index: {}]
  %s2 = inlined_call_operand.vmem [shape: f32[1,256], index: 2, kind: input, shape index: {}]
  %s3 = inlined_call_operand.vmem [shape: bf16[256,128], index: 3, kind: input, shape index: {}]
  %s4 = inlined_call_operand.hbm [shape: f32[1,128], index: 4, kind: input, shape index: {}]
  %s5 = inlined_call_operand.vmem [shape: bf16[128,64], index: 5, kind: input, shape index: {}]
  %s6 = inlined_call_operand.hbm [shape: f32[1,64], index: 6, kind: input, shape index: {}]
  %s7 = inlined_call_operand.vmem [shape: bf16[64,128], index: 7, kind: input, shape index: {}]
  %s8 = inlined_call_operand.hbm [shape: f32[1,128], index: 8, kind: input, shape index: {}]
  %s9 = inlined_call_operand.vmem [shape: bf16[128,32], index: 9, kind: input, shape index: {}]
  %s10 = inlined_call_operand.hbm [shape: f32[1,32], index: 10, kind: input, shape index: {}]
  %s11 = inlined_call_operand.hbm [shape: f32[1,32], index: 11, kind: input, shape index: {}]
  %s12 = inlined_call_operand.<no memory space> [shape: f32[1,1], index: 12, kind: input, shape index: {}]
  %s13 = inlined_call_operand.vmem [shape: bf16[8,128], index: 13, kind: output, shape index: {}]
  %s14 = sld [smem:[#allocation0]]
  $region116: #{dann_forward.1} parent=0
    _
  %s16 = ssub.s32 1, %s14
  %s17 = scalar_select 0, %s16, %s14
  %v18 = vstv %s12
  %19 = vst [vmem:[#allocation2] sm:$0x1] %v18
  $region1: #{dann_forward.1} parent=0
    #allocation3 [shape = 'u8[159744]{0}', space=vmem, size = 0x27000, scoped, tag = 'input window, operand 1, single buffered']
    #allocation4 [shape = 's32[1]{0}', space=sflag, size = 0x4, scoped, tag = 'scoped memory for dann_forward.1']
    #allocation5 [shape = 'u8[512]{0}', space=vmem, size = 0x400, scoped, tag = 'input window, operand 4, single buffered']
    #allocation6 [shape = 's32[1]{0}', space=sflag, size = 0x4, scoped, tag = 'scoped memory for dann_forward.1']
    #allocation7 [shape = 'u8[512]{0}', space=vmem, size = 0x400, scoped, tag = 'input window, operand 6, single buffered']
    #allocation8 [shape = 'u8[512]{0}', space=vmem, size = 0x400, scoped, tag = 'input window, operand 8, single buffered']
    #allocation9 [shape = 's32[1]{0}', space=sflag, size = 0x4, scoped, tag = 'scoped memory for dann_forward.1']
    #allocation10 [shape = 'u8[512]{0}', space=vmem, size = 0x400, scoped, tag = 'input window, operand 10, single buffered']
    #allocation11 [shape = 'u8[512]{0}', space=vmem, size = 0x400, scoped, tag = 'input window, operand 11, single buffered']
    #allocation12 [shape = 's32[1]{0}', space=sflag, size = 0x4, scoped, tag = 'scoped memory for dann_forward.1']
    #allocation13 [shape = 'u8[4096]{0}', space=vmem, size = 0x1000, scoped, tag = 'output window, operand 0, single buffered']
    %20 = vsyncpa [#allocation4], 0
    %21 = vsyncpa [#allocation6], 0
    %22 = vsyncpa [#allocation9], 0
    %23 = vsyncpa [#allocation12], 0
    // Predicated region
    $region2: #{dann_forward.1} parent=1 // pred_check
      _
    $region3: #{dann_forward.1} parent=1 // pred_check_branch
      %25 = sbr.rel (0) target = $region5
    $region4: #{dann_forward.1} parent=1 // pred_region
      _
    $region5: #{dann_forward.1} parent=1 // pred_fallthru
      _
    // Predicated region
    $region6: #{dann_forward.1} parent=1 // pred_check
      _
    $region7: #{dann_forward.1} parent=1 // pred_check_branch
      %27 = sbr.rel (0) target = $region9
    $region8: #{dann_forward.1} parent=1 // pred_region
      %29 = vsyncadd [#allocation4], 0
      %s30 = sshll.u32 %s1, 4
      %s31 = int_to_ptr.hbm [resolvable:$true] %s30
      %s32 = sshll.u32 [#allocation3], 4
      %s33 = int_to_ptr.vmem [resolvable:$true] %s32
      %38 = dma.hbm_to_vmem [thread:$0]  %s31, 4992, %s33, [#allocation4], 128, 128, 8
    $region9: #{dann_forward.1} parent=1 // pred_fallthru
      _
    // Predicated region
    $region10: #{dann_forward.1} parent=1 // pred_check
      _
    $region11: #{dann_forward.1} parent=1 // pred_check_branch
      %40 = sbr.rel (0) target = $region13
    $region12: #{dann_forward.1} parent=1 // pred_region
      _
    $region13: #{dann_forward.1} parent=1 // pred_fallthru
      _
    // Predicated region
    $region14: #{dann_forward.1} parent=1 // pred_check
      _
    $region15: #{dann_forward.1} parent=1 // pred_check_branch
      %42 = sbr.rel (0) target = $region17
    $region16: #{dann_forward.1} parent=1 // pred_region
      _
    $region17: #{dann_forward.1} parent=1 // pred_fallthru
      _
    // Predicated region
    $region18: #{dann_forward.1} parent=1 // pred_check
      _
    $region19: #{dann_forward.1} parent=1 // pred_check_branch
      %44 = sbr.rel (0) target = $region21
    $region20: #{dann_forward.1} parent=1 // pred_region
      %46 = vsyncadd [#allocation6], 0
      %s48 = sshll.u32 %s4, 4
      %s49 = int_to_ptr.hbm [resolvable:$true] %s48
      %s50 = sshll.u32 [#allocation5], 4
      %s51 = int_to_ptr.vmem [resolvable:$true] %s50
      %53 = dma.hbm_to_vmem [thread:$0]  %s49, 16, %s51, [#allocation6]
    $region21: #{dann_forward.1} parent=1 // pred_fallthru
      _
    // Predicated region
    $region22: #{dann_forward.1} parent=1 // pred_check
      _
    $region23: #{dann_forward.1} parent=1 // pred_check_branch
      %55 = sbr.rel (0) target = $region25
    $region24: #{dann_forward.1} parent=1 // pred_region
      _
    $region25: #{dann_forward.1} parent=1 // pred_fallthru
      _
    // Predicated region
    $region26: #{dann_forward.1} parent=1 // pred_check
      _
    $region27: #{dann_forward.1} parent=1 // pred_check_branch
      %57 = sbr.rel (0) target = $region29
    $region28: #{dann_forward.1} parent=1 // pred_region
      %59 = vsyncadd [#allocation6], 0
      %s61 = sshll.u32 %s6, 4
      %s62 = int_to_ptr.hbm [resolvable:$true] %s61
      %s63 = sshll.u32 [#allocation7], 4
      %s64 = int_to_ptr.vmem [resolvable:$true] %s63
      %66 = dma.hbm_to_vmem [thread:$0]  %s62, 16, %s64, [#allocation6]
    $region29: #{dann_forward.1} parent=1 // pred_fallthru
      _
    // Predicated region
    $region30: #{dann_forward.1} parent=1 // pred_check
      _
    $region31: #{dann_forward.1} parent=1 // pred_check_branch
      %68 = sbr.rel (0) target = $region33
    $region32: #{dann_forward.1} parent=1 // pred_region
      _
    $region33: #{dann_forward.1} parent=1 // pred_fallthru
      _
    // Predicated region
    $region34: #{dann_forward.1} parent=1 // pred_check
      _
    $region35: #{dann_forward.1} parent=1 // pred_check_branch
      %70 = sbr.rel (0) target = $region37
    $region36: #{dann_forward.1} parent=1 // pred_region
      %72 = vsyncadd [#allocation9], 0
      %s74 = sshll.u32 %s8, 4
      %s75 = int_to_ptr.hbm [resolvable:$true] %s74
      %s76 = sshll.u32 [#allocation8], 4
      %s77 = int_to_ptr.vmem [resolvable:$true] %s76
      %79 = dma.hbm_to_vmem [thread:$0]  %s75, 16, %s77, [#allocation9]
    $region37: #{dann_forward.1} parent=1 // pred_fallthru
      _
    // Predicated region
    $region38: #{dann_forward.1} parent=1 // pred_check
      _
    $region39: #{dann_forward.1} parent=1 // pred_check_branch
      %81 = sbr.rel (0) target = $region41
    $region40: #{dann_forward.1} parent=1 // pred_region
      _
    $region41: #{dann_forward.1} parent=1 // pred_fallthru
      _
    // Predicated region
    $region42: #{dann_forward.1} parent=1 // pred_check
      _
    $region43: #{dann_forward.1} parent=1 // pred_check_branch
      %83 = sbr.rel (0) target = $region45
    $region44: #{dann_forward.1} parent=1 // pred_region
      %85 = vsyncadd [#allocation9], 0
      %s87 = sshll.u32 %s10, 4
      %s88 = int_to_ptr.hbm [resolvable:$true] %s87
      %s89 = sshll.u32 [#allocation10], 4
      %s90 = int_to_ptr.vmem [resolvable:$true] %s89
      %92 = dma.hbm_to_vmem [thread:$0]  %s88, 16, %s90, [#allocation9]
    $region45: #{dann_forward.1} parent=1 // pred_fallthru
      _
    // Predicated region
    $region46: #{dann_forward.1} parent=1 // pred_check
      _
    $region47: #{dann_forward.1} parent=1 // pred_check_branch
      %94 = sbr.rel (0) target = $region49
    $region48: #{dann_forward.1} parent=1 // pred_region
      %96 = vsyncadd [#allocation12], 0
      %s98 = sshll.u32 %s11, 4
      %s99 = int_to_ptr.hbm [resolvable:$true] %s98
      %s100 = sshll.u32 [#allocation11], 4
      %s101 = int_to_ptr.vmem [resolvable:$true] %s100
      %103 = dma.hbm_to_vmem [thread:$0]  %s99, 16, %s101, [#allocation12]
    $region49: #{dann_forward.1} parent=1 // pred_fallthru
      _
    // Predicated region
    $region50: #{dann_forward.1} parent=1 // pred_check
      _
    $region51: #{dann_forward.1} parent=1 // pred_check_branch
      %105 = sbr.rel (0) target = $region53
    $region52: #{dann_forward.1} parent=1 // pred_region
      _
    $region53: #{dann_forward.1} parent=1 // pred_fallthru
      _
    // Predicated region
    $region54: #{dann_forward.1} parent=1 // pred_check
      _
    $region55: #{dann_forward.1} parent=1 // pred_check_branch
      %107 = sbr.rel (0) target = $region57
    $region56: #{dann_forward.1} parent=1 // pred_region
      %109 = dma.done [#allocation4], 4992
    $region57: #{dann_forward.1} parent=1 // pred_fallthru
      _
    // Predicated region
    $region58: #{dann_forward.1} parent=1 // pred_check
      _
    $region59: #{dann_forward.1} parent=1 // pred_check_branch
      %111 = sbr.rel (0) target = $region61
    $region60: #{dann_forward.1} parent=1 // pred_region
      %113 = dma.done [#allocation6], 16
    $region61: #{dann_forward.1} parent=1 // pred_fallthru
      _
    // Predicated region
    $region62: #{dann_forward.1} parent=1 // pred_check
      _
    $region63: #{dann_forward.1} parent=1 // pred_check_branch
      %115 = sbr.rel (0) target = $region65
    $region64: #{dann_forward.1} parent=1 // pred_region
      %117 = dma.done [#allocation6], 16
    $region65: #{dann_forward.1} parent=1 // pred_fallthru
      _
    // Predicated region
    $region66: #{dann_forward.1} parent=1 // pred_check
      _
    $region67: #{dann_forward.1} parent=1 // pred_check_branch
      %119 = sbr.rel (0) target = $region69
    $region68: #{dann_forward.1} parent=1 // pred_region
      %121 = dma.done [#allocation9], 16
    $region69: #{dann_forward.1} parent=1 // pred_fallthru
      _
    // Predicated region
    $region70: #{dann_forward.1} parent=1 // pred_check
      _
    $region71: #{dann_forward.1} parent=1 // pred_check_branch
      %123 = sbr.rel (0) target = $region73
    $region72: #{dann_forward.1} parent=1 // pred_region
      %125 = dma.done [#allocation9], 16
    $region73: #{dann_forward.1} parent=1 // pred_fallthru
      _
    // Predicated region
    $region74: #{dann_forward.1} parent=1 // pred_check
      _
    $region75: #{dann_forward.1} parent=1 // pred_check_branch
      %127 = sbr.rel (0) target = $region77
    $region76: #{dann_forward.1} parent=1 // pred_region
      %129 = dma.done [#allocation12], 16
    $region77: #{dann_forward.1} parent=1 // pred_fallthru
      _
    %v131 = vld [vmem:[%s0] sm:$0xff]
    %v132 = vld [vmem:[%s0 + $0x8] sm:$0xff]
    %v133 = vld [vmem:[%s0 + $0x10] sm:$0xff]
    %v134 = vld [vmem:[%s0 + $0x18] sm:$0xff]
    %v135 = vld [vmem:[%s0 + $0x20] sm:$0xff]
    %v136 = vld [vmem:[%s0 + $0x28] sm:$0xff]
    %v137 = vpack.c.bf16 %v134, %v131
    %v138 = vpack.c.bf16 %v135, %v132
    %v139 = vpack.c.bf16 %v136, %v133
    %v140 = vld [vmem:[#allocation3] sm:$0xff]
    %v141 = vld [vmem:[#allocation3 + $0x8] sm:$0xff]
    %v142 = vld [vmem:[#allocation3 + $0x10] sm:$0xff]
    %v143 = vld [vmem:[#allocation3 + $0x18] sm:$0xff]
    %v144 = vld [vmem:[#allocation3 + $0x20] sm:$0xff]
    %v145 = vld [vmem:[#allocation3 + $0x28] sm:$0xff]
    %v146 = vld [vmem:[#allocation3 + $0x30] sm:$0xff]
    %v147 = vld [vmem:[#allocation3 + $0x38] sm:$0xff]
    %v148 = vld [vmem:[#allocation3 + $0x40] sm:$0xff]
    %v149 = vld [vmem:[#allocation3 + $0x48] sm:$0xff]
    %v150 = vld [vmem:[#allocation3 + $0x50] sm:$0xff]
    %v151 = vld [vmem:[#allocation3 + $0x58] sm:$0xff]
    %v152 = vld [vmem:[#allocation3 + $0x60] sm:$0xff]
    %v153 = vld [vmem:[#allocation3 + $0x68] sm:$0xff]
    %v154 = vld [vmem:[#allocation3 + $0x70] sm:$0xff]
    %v155 = vld [vmem:[#allocation3 + $0x78] sm:$0xff]
    %v156 = vld [vmem:[#allocation3 + $0x80] sm:$0xff]
    %v157 = vld [vmem:[#allocation3 + $0x88] sm:$0xff]
    %v158 = vld [vmem:[#allocation3 + $0x90] sm:$0xff]
    %v159 = vld [vmem:[#allocation3 + $0x98] sm:$0xff]
    %v160 = vld [vmem:[#allocation3 + $0xa0] sm:$0xff]
    %v161 = vld [vmem:[#allocation3 + $0xa8] sm:$0xff]
    %v162 = vld [vmem:[#allocation3 + $0xb0] sm:$0xff]
    %v163 = vld [vmem:[#allocation3 + $0xb8] sm:$0xff]
    %v164 = vld [vmem:[#allocation3 + $0xc0] sm:$0xff]
    %v165 = vld [vmem:[#allocation3 + $0xc8] sm:$0xff]
    %v166 = vld [vmem:[#allocation3 + $0xd0] sm:$0xff]
    %v167 = vld [vmem:[#allocation3 + $0xd8] sm:$0xff]
    %v168 = vld [vmem:[#allocation3 + $0xe0] sm:$0xff]
    %v169 = vld [vmem:[#allocation3 + $0xe8] sm:$0xff]
    %v170 = vld [vmem:[#allocation3 + $0xf0] sm:$0xff]
    %v171 = vld [vmem:[#allocation3 + $0xf8] sm:$0xff]
    %v172 = vld [vmem:[#allocation3 + $0x100] sm:$0xff]
    %v173 = vld [vmem:[#allocation3 + $0x108] sm:$0xff]
    %v174 = vld [vmem:[#allocation3 + $0x110] sm:$0xff]
    %v175 = vld [vmem:[#allocation3 + $0x118] sm:$0xff]
    %v176 = vld [vmem:[#allocation3 + $0x120] sm:$0xff]
    %v177 = vld [vmem:[#allocation3 + $0x128] sm:$0xff]
    %v178 = vld [vmem:[#allocation3 + $0x130] sm:$0x77]
    %v179 = vld [vmem:[%s2] sm:$0x3]
    %v181 = vperm.slane %v179, 0
    %v182 = vperm.slane %v179, 1
    %v224 = vunpack.c.l.b16 %v140
    %v225 = vunpack.c.h.b16 %v140
    %v226 = vunpack.c.l.b16 %v141
    %v227 = vunpack.c.h.b16 %v141
    %v228 = vunpack.c.l.b16 %v142
    %v229 = vunpack.c.h.b16 %v142
    %v230 = vunpack.c.l.b16 %v143
    %v231 = vunpack.c.h.b16 %v143
    %v232 = vunpack.c.l.b16 %v144
    %v233 = vunpack.c.h.b16 %v144
    %v234 = vunpack.c.l.b16 %v145
    %v235 = vunpack.c.h.b16 %v145
    %v236 = vunpack.c.l.b16 %v146
    %v237 = vunpack.c.h.b16 %v146
    %v238 = vunpack.c.l.b16 %v147
    %v239 = vunpack.c.h.b16 %v147
    %v240 = vunpack.c.l.b16 %v148
    %v241 = vunpack.c.h.b16 %v148
    %v242 = vunpack.c.l.b16 %v149
    %v243 = vunpack.c.h.b16 %v149
    %v244 = vunpack.c.l.b16 %v150
    %v245 = vunpack.c.h.b16 %v150
    %v246 = vunpack.c.l.b16 %v151
    %v247 = vunpack.c.h.b16 %v151
    %v248 = vunpack.c.l.b16 %v152
    %v249 = vunpack.c.h.b16 %v152
    %v250 = vunpack.c.l.b16 %v153
    %v251 = vunpack.c.h.b16 %v153
    %v252 = vunpack.c.l.b16 %v154
    %v253 = vunpack.c.h.b16 %v154
    %v254 = vunpack.c.l.b16 %v155
    %v255 = vunpack.c.h.b16 %v155
    %v256 = vunpack.c.l.b16 %v156
    %v257 = vunpack.c.h.b16 %v156
    %v258 = vunpack.c.l.b16 %v157
    %v259 = vunpack.c.h.b16 %v157
    %v260 = vunpack.c.l.b16 %v158
    %v261 = vunpack.c.h.b16 %v158
    %v262 = vunpack.c.l.b16 %v159
    %v263 = vunpack.c.h.b16 %v159
    %v264 = vunpack.c.l.b16 %v160
    %v265 = vunpack.c.h.b16 %v160
    %v266 = vunpack.c.l.b16 %v161
    %v267 = vunpack.c.h.b16 %v161
    %v268 = vunpack.c.l.b16 %v162
    %v269 = vunpack.c.h.b16 %v162
    %v270 = vunpack.c.l.b16 %v163
    %v271 = vunpack.c.h.b16 %v163
    %v272 = vunpack.c.l.b16 %v164
    %v273 = vunpack.c.h.b16 %v164
    %v274 = vunpack.c.l.b16 %v165
    %v275 = vunpack.c.h.b16 %v165
    %v276 = vunpack.c.l.b16 %v166
    %v277 = vunpack.c.h.b16 %v166
    %v278 = vunpack.c.l.b16 %v167
    %v279 = vunpack.c.h.b16 %v167
    %v280 = vunpack.c.l.b16 %v168
    %v281 = vunpack.c.h.b16 %v168
    %v282 = vunpack.c.l.b16 %v169
    %v283 = vunpack.c.h.b16 %v169
    %v284 = vunpack.c.l.b16 %v170
    %v285 = vunpack.c.h.b16 %v170
    %v286 = vunpack.c.l.b16 %v171
    %v287 = vunpack.c.h.b16 %v171
    %v288 = vunpack.c.l.b16 %v172
    %v289 = vunpack.c.h.b16 %v172
    %v290 = vunpack.c.l.b16 %v173
    %v291 = vunpack.c.h.b16 %v173
    %v292 = vunpack.c.l.b16 %v174
    %v293 = vunpack.c.h.b16 %v174
    %v294 = vunpack.c.l.b16 %v175
    %v295 = vunpack.c.h.b16 %v175
    %v296 = vunpack.c.l.b16 %v176
    %v297 = vunpack.c.h.b16 %v176
    %v298 = vunpack.c.l.b16 %v177
    %v299 = vunpack.c.h.b16 %v177
    %v300 = vunpack.c.l.b16 %v178
    %v301 = vunpack.c.h.b16 %v178
    %v302 = vpack.c.b16 %v226, %v224
    %v303 = vpack.c.b16 %v227, %v225
    %v304 = vpack.c.b16 %v230, %v228
    %v305 = vpack.c.b16 %v231, %v229
    %v306 = vpack.c.b16 %v234, %v232
    %v307 = vpack.c.b16 %v235, %v233
    %v308 = vpack.c.b16 %v238, %v236
    %v309 = vpack.c.b16 %v239, %v237
    %v310 = vpack.c.b16 %v242, %v240
    %v311 = vpack.c.b16 %v243, %v241
    %v312 = vpack.c.b16 %v246, %v244
    %v313 = vpack.c.b16 %v247, %v245
    %v314 = vpack.c.b16 %v250, %v248
    %v315 = vpack.c.b16 %v251, %v249
    %v316 = vpack.c.b16 %v254, %v252
    %v317 = vpack.c.b16 %v255, %v253
    %v318 = vpack.c.b16 %v258, %v256
    %v319 = vpack.c.b16 %v259, %v257
    %v320 = vpack.c.b16 %v262, %v260
    %v321 = vpack.c.b16 %v263, %v261
    %v322 = vpack.c.b16 %v266, %v264
    %v323 = vpack.c.b16 %v267, %v265
    %v324 = vpack.c.b16 %v270, %v268
    %v325 = vpack.c.b16 %v271, %v269
    %v326 = vpack.c.b16 %v274, %v272
    %v327 = vpack.c.b16 %v275, %v273
    %v328 = vpack.c.b16 %v278, %v276
    %v329 = vpack.c.b16 %v279, %v277
    %v330 = vpack.c.b16 %v282, %v280
    %v331 = vpack.c.b16 %v283, %v281
    %v332 = vpack.c.b16 %v286, %v284
    %v333 = vpack.c.b16 %v287, %v285
    %v334 = vpack.c.b16 %v290, %v288
    %v335 = vpack.c.b16 %v291, %v289
    %v336 = vpack.c.b16 %v294, %v292
    %v337 = vpack.c.b16 %v295, %v293
    %v338 = vpack.c.b16 %v298, %v296
    %v339 = vpack.c.b16 %v299, %v297
    %v340 = vpack.c.b16 %v300, %v300
    %v341 = vpack.c.b16 %v301, %v301
    %vm380 = vcmask 441344
    %v382 = vsel %vm380, %v139, 0
    %vm384 = vcmask 1042432
    %v386 = vsel %vm384, %v340, 0
    %v389 = vsel %vm384, %v341, 0
    %391 = vmatpush.bf16.msra.mxu0 %v316
    %392 = vmatpush.bf16.msra.mxu0 %v314
    %393 = vmatpush.bf16.msra.mxu0 %v312
    %394 = vmatpush.bf16.msra.mxu0 %v310
    %395 = vmatpush.bf16.msra.mxu0 %v308
    %396 = vmatpush.bf16.msra.mxu0 %v306
    %397 = vmatpush.bf16.msra.mxu0 %v304
    %398 = vmatpush.bf16.msra.mxu0 %v302
    %399 = vmatmul.bf16.gmra.mxu0 %v137
    %v400 = vpop.f32.mrf.mxu0
    %v401 = vadd.f32 %v181, %v400
    %v402 = vpop.f32.mrf.mxu0
    %v403 = vadd.f32 %v181, %v402
    %404 = vdwg.mxu0
    %405 = vmatpush.bf16.msra.mxu0 %v332
    %406 = vmatpush.bf16.msra.mxu0 %v330
    %407 = vmatpush.bf16.msra.mxu0 %v328
    %408 = vmatpush.bf16.msra.mxu0 %v326
    %409 = vmatpush.bf16.msra.mxu0 %v324
    %410 = vmatpush.bf16.msra.mxu0 %v322
    %411 = vmatpush.bf16.msra.mxu0 %v320
    %412 = vmatpush.bf16.msra.mxu0 %v318
    %413 = vmatmul.bf16.gmra.mxu0 %v138
    %v414 = vpop.f32.mrf.mxu0
    %v415 = vadd.f32 %v401, %v414
    %v416 = vpop.f32.mrf.mxu0
    %v417 = vadd.f32 %v403, %v416
    %418 = vdwg.mxu0
    %419 = vmatpush.bf16.msra.mxu0 0
    %420 = vmatpush.bf16.msra.mxu0 0
    %421 = vmatpush.bf16.msra.mxu0 0
    %422 = vmatpush.bf16.msra.mxu0 0
    %423 = vmatpush.bf16.msra.mxu0 %v386
    %424 = vmatpush.bf16.msra.mxu0 %v338
    %425 = vmatpush.bf16.msra.mxu0 %v336
    %426 = vmatpush.bf16.msra.mxu0 %v334
    %427 = vmatmul.bf16.gmra.mxu0 %v382
    %v428 = vpop.f32.mrf.mxu0
    %v429 = vadd.f32 %v415, %v428
    %v430 = vpop.f32.mrf.mxu0
    %v431 = vadd.f32 %v417, %v430
    %432 = vdwg.mxu0
    %433 = vmatpush.bf16.msra.mxu0 %v317
    %434 = vmatpush.bf16.msra.mxu0 %v315
    %435 = vmatpush.bf16.msra.mxu0 %v313
    %436 = vmatpush.bf16.msra.mxu0 %v311
    %437 = vmatpush.bf16.msra.mxu0 %v309
    %438 = vmatpush.bf16.msra.mxu0 %v307
    %439 = vmatpush.bf16.msra.mxu0 %v305
    %440 = vmatpush.bf16.msra.mxu0 %v303
    %441 = vmatmul.bf16.gmra.mxu0 %v137
    %v442 = vpop.f32.mrf.mxu0
    %v443 = vadd.f32 %v182, %v442
    %v444 = vpop.f32.mrf.mxu0
    %v445 = vadd.f32 %v182, %v444
    %446 = vdwg.mxu0
    %447 = vmatpush.bf16.msra.mxu0 %v333
    %448 = vmatpush.bf16.msra.mxu0 %v331
    %449 = vmatpush.bf16.msra.mxu0 %v329
    %450 = vmatpush.bf16.msra.mxu0 %v327
    %451 = vmatpush.bf16.msra.mxu0 %v325
    %452 = vmatpush.bf16.msra.mxu0 %v323
    %453 = vmatpush.bf16.msra.mxu0 %v321
    %454 = vmatpush.bf16.msra.mxu0 %v319
    %455 = vmatmul.bf16.gmra.mxu0 %v138
    %v456 = vpop.f32.mrf.mxu0
    %v457 = vadd.f32 %v443, %v456
    %v458 = vpop.f32.mrf.mxu0
    %v459 = vadd.f32 %v445, %v458
    %460 = vdwg.mxu0
    %461 = vmatpush.bf16.msra.mxu0 0
    %462 = vmatpush.bf16.msra.mxu0 0
    %463 = vmatpush.bf16.msra.mxu0 0
    %464 = vmatpush.bf16.msra.mxu0 0
    %465 = vmatpush.bf16.msra.mxu0 %v389
    %466 = vmatpush.bf16.msra.mxu0 %v339
    %467 = vmatpush.bf16.msra.mxu0 %v337
    %468 = vmatpush.bf16.msra.mxu0 %v335
    %469 = vmatmul.bf16.gmra.mxu0 %v382
    %v470 = vpop.f32.mrf.mxu0
    %v471 = vadd.f32 %v457, %v470
    %v472 = vpop.f32.mrf.mxu0
    %v473 = vadd.f32 %v459, %v472
    %474 = vdwg.mxu0
    %vm475 = vcmp.gt.f32.partialorder %v429, 0.0
    %vm476 = vcmp.gt.f32.partialorder %v471, 0.0
    %vm477 = vcmp.gt.f32.partialorder %v431, 0.0
    %vm478 = vcmp.gt.f32.partialorder %v473, 0.0
    %v479 = vmul.f32 %v429, 0.01
    %v480 = vmul.f32 %v471, 0.01
    %v481 = vmul.f32 %v431, 0.01
    %v482 = vmul.f32 %v473, 0.01
    %v483 = vsel %vm475, %v429, %v479
    %v484 = vsel %vm476, %v471, %v480
    %v485 = vsel %vm477, %v431, %v481
    %v486 = vsel %vm478, %v473, %v482
    %v487 = vpack.c.bf16 %v485, %v483
    %v488 = vpack.c.bf16 %v486, %v484
    %v489 = vld [vmem:[%s3] sm:$0xf]
    %v490 = vld [vmem:[%s3 + $0x4] sm:$0xf]
    %v491 = vld [vmem:[%s3 + $0x8] sm:$0xf]
    %v492 = vld [vmem:[%s3 + $0xc] sm:$0xf]
    %v493 = vld [vmem:[%s3 + $0x10] sm:$0xf]
    %v494 = vld [vmem:[%s3 + $0x14] sm:$0xf]
    %v495 = vld [vmem:[%s3 + $0x18] sm:$0xf]
    %v496 = vld [vmem:[%s3 + $0x1c] sm:$0xf]
    %v497 = vld [vmem:[%s3 + $0x20] sm:$0xf]
    %v498 = vld [vmem:[%s3 + $0x24] sm:$0xf]
    %v499 = vld [vmem:[%s3 + $0x28] sm:$0xf]
    %v500 = vld [vmem:[%s3 + $0x2c] sm:$0xf]
    %v501 = vld [vmem:[%s3 + $0x30] sm:$0xf]
    %v502 = vld [vmem:[%s3 + $0x34] sm:$0xf]
    %v503 = vld [vmem:[%s3 + $0x38] sm:$0xf]
    %v504 = vld [vmem:[%s3 + $0x3c] sm:$0xf]
    %v505 = vld [vmem:[%s3 + $0x40] sm:$0xf]
    %v506 = vld [vmem:[%s3 + $0x44] sm:$0xf]
    %v507 = vld [vmem:[%s3 + $0x48] sm:$0xf]
    %v508 = vld [vmem:[%s3 + $0x4c] sm:$0xf]
    %v509 = vld [vmem:[%s3 + $0x50] sm:$0xf]
    %v510 = vld [vmem:[%s3 + $0x54] sm:$0xf]
    %v511 = vld [vmem:[%s3 + $0x58] sm:$0xf]
    %v512 = vld [vmem:[%s3 + $0x5c] sm:$0xf]
    %v513 = vld [vmem:[%s3 + $0x60] sm:$0xf]
    %v514 = vld [vmem:[%s3 + $0x64] sm:$0xf]
    %v515 = vld [vmem:[%s3 + $0x68] sm:$0xf]
    %v516 = vld [vmem:[%s3 + $0x6c] sm:$0xf]
    %v517 = vld [vmem:[%s3 + $0x70] sm:$0xf]
    %v518 = vld [vmem:[%s3 + $0x74] sm:$0xf]
    %v519 = vld [vmem:[%s3 + $0x78] sm:$0xf]
    %v520 = vld [vmem:[%s3 + $0x7c] sm:$0xf]
    %v521 = vld [vmem:[#allocation5] sm:$0x1]
    %v523 = vperm.slane %v521, 0
    %v557 = vunpack.c.l.b16 %v489
    %v558 = vunpack.c.l.b16 %v490
    %v559 = vunpack.c.l.b16 %v491
    %v560 = vunpack.c.l.b16 %v492
    %v561 = vunpack.c.l.b16 %v493
    %v562 = vunpack.c.l.b16 %v494
    %v563 = vunpack.c.l.b16 %v495
    %v564 = vunpack.c.l.b16 %v496
    %v565 = vunpack.c.l.b16 %v497
    %v566 = vunpack.c.l.b16 %v498
    %v567 = vunpack.c.l.b16 %v499
    %v568 = vunpack.c.l.b16 %v500
    %v569 = vunpack.c.l.b16 %v501
    %v570 = vunpack.c.l.b16 %v502
    %v571 = vunpack.c.l.b16 %v503
    %v572 = vunpack.c.l.b16 %v504
    %v573 = vunpack.c.l.b16 %v505
    %v574 = vunpack.c.l.b16 %v506
    %v575 = vunpack.c.l.b16 %v507
    %v576 = vunpack.c.l.b16 %v508
    %v577 = vunpack.c.l.b16 %v509
    %v578 = vunpack.c.l.b16 %v510
    %v579 = vunpack.c.l.b16 %v511
    %v580 = vunpack.c.l.b16 %v512
    %v581 = vunpack.c.l.b16 %v513
    %v582 = vunpack.c.l.b16 %v514
    %v583 = vunpack.c.l.b16 %v515
    %v584 = vunpack.c.l.b16 %v516
    %v585 = vunpack.c.l.b16 %v517
    %v586 = vunpack.c.l.b16 %v518
    %v587 = vunpack.c.l.b16 %v519
    %v588 = vunpack.c.l.b16 %v520
    %v589 = vpack.c.b16 %v558, %v557
    %v590 = vpack.c.b16 %v560, %v559
    %v591 = vpack.c.b16 %v562, %v561
    %v592 = vpack.c.b16 %v564, %v563
    %v593 = vpack.c.b16 %v566, %v565
    %v594 = vpack.c.b16 %v568, %v567
    %v595 = vpack.c.b16 %v570, %v569
    %v596 = vpack.c.b16 %v572, %v571
    %v597 = vpack.c.b16 %v574, %v573
    %v598 = vpack.c.b16 %v576, %v575
    %v599 = vpack.c.b16 %v578, %v577
    %v600 = vpack.c.b16 %v580, %v579
    %v601 = vpack.c.b16 %v582, %v581
    %v602 = vpack.c.b16 %v584, %v583
    %v603 = vpack.c.b16 %v586, %v585
    %v604 = vpack.c.b16 %v588, %v587
    %621 = vmatpush.bf16.msra.mxu0 %v596
    %622 = vmatpush.bf16.msra.mxu0 %v595
    %623 = vmatpush.bf16.msra.mxu0 %v594
    %624 = vmatpush.bf16.msra.mxu0 %v593
    %625 = vmatpush.bf16.msra.mxu0 %v592
    %626 = vmatpush.bf16.msra.mxu0 %v591
    %627 = vmatpush.bf16.msra.mxu0 %v590
    %628 = vmatpush.bf16.msra.mxu0 %v589
    %629 = vmatmul.bf16.gmra.mxu0 %v487
    %v630 = vpop.f32.mrf.mxu0
    %v631 = vadd.f32 %v523, %v630
    %v632 = vpop.f32.mrf.mxu0
    %v633 = vadd.f32 %v523, %v632
    %634 = vdwg.mxu0
    %635 = vmatpush.bf16.msra.mxu0 %v604
    %636 = vmatpush.bf16.msra.mxu0 %v603
    %637 = vmatpush.bf16.msra.mxu0 %v602
    %638 = vmatpush.bf16.msra.mxu0 %v601
    %639 = vmatpush.bf16.msra.mxu0 %v600
    %640 = vmatpush.bf16.msra.mxu0 %v599
    %641 = vmatpush.bf16.msra.mxu0 %v598
    %642 = vmatpush.bf16.msra.mxu0 %v597
    %643 = vmatmul.bf16.gmra.mxu0 %v488
    %v644 = vpop.f32.mrf.mxu0
    %v645 = vadd.f32 %v631, %v644
    %v646 = vpop.f32.mrf.mxu0
    %v647 = vadd.f32 %v633, %v646
    %648 = vdwg.mxu0
    %vm649 = vcmp.gt.f32.partialorder %v645, 0.0
    %vm650 = vcmp.gt.f32.partialorder %v647, 0.0
    %v651 = vmul.f32 %v645, 0.01
    %v652 = vmul.f32 %v647, 0.01
    %v653 = vsel %vm649, %v645, %v651
    %v654 = vsel %vm650, %v647, %v652
    %v655 = vpack.c.bf16 %v654, %v653
    %v656 = vld [vmem:[%s5] sm:$0xf]
    %v657 = vld [vmem:[%s5 + $0x4] sm:$0xf]
    %v658 = vld [vmem:[%s5 + $0x8] sm:$0xf]
    %v659 = vld [vmem:[%s5 + $0xc] sm:$0xf]
    %v660 = vld [vmem:[%s5 + $0x10] sm:$0xf]
    %v661 = vld [vmem:[%s5 + $0x14] sm:$0xf]
    %v662 = vld [vmem:[%s5 + $0x18] sm:$0xf]
    %v663 = vld [vmem:[%s5 + $0x1c] sm:$0xf]
    %v664 = vld [vmem:[%s5 + $0x20] sm:$0xf]
    %v665 = vld [vmem:[%s5 + $0x24] sm:$0xf]
    %v666 = vld [vmem:[%s5 + $0x28] sm:$0xf]
    %v667 = vld [vmem:[%s5 + $0x2c] sm:$0xf]
    %v668 = vld [vmem:[%s5 + $0x30] sm:$0xf]
    %v669 = vld [vmem:[%s5 + $0x34] sm:$0xf]
    %v670 = vld [vmem:[%s5 + $0x38] sm:$0xf]
    %v671 = vld [vmem:[%s5 + $0x3c] sm:$0xf]
    %v672 = vld [vmem:[#allocation7] sm:$0x1]
    %v674 = vperm.slane %v672, 0
    %v692 = vunpack.c.l.b16 %v656
    %v693 = vunpack.c.l.b16 %v657
    %v694 = vunpack.c.l.b16 %v658
    %v695 = vunpack.c.l.b16 %v659
    %v696 = vunpack.c.l.b16 %v660
    %v697 = vunpack.c.l.b16 %v661
    %v698 = vunpack.c.l.b16 %v662
    %v699 = vunpack.c.l.b16 %v663
    %v700 = vunpack.c.l.b16 %v664
    %v701 = vunpack.c.l.b16 %v665
    %v702 = vunpack.c.l.b16 %v666
    %v703 = vunpack.c.l.b16 %v667
    %v704 = vunpack.c.l.b16 %v668
    %v705 = vunpack.c.l.b16 %v669
    %v706 = vunpack.c.l.b16 %v670
    %v707 = vunpack.c.l.b16 %v671
    %v708 = vpack.c.b16 %v693, %v692
    %v709 = vpack.c.b16 %v695, %v694
    %v710 = vpack.c.b16 %v697, %v696
    %v711 = vpack.c.b16 %v699, %v698
    %v712 = vpack.c.b16 %v701, %v700
    %v713 = vpack.c.b16 %v703, %v702
    %v714 = vpack.c.b16 %v705, %v704
    %v715 = vpack.c.b16 %v707, %v706
    %724 = vmatpush.bf16.msra.mxu0 %v715
    %725 = vmatpush.bf16.msra.mxu0 %v714
    %726 = vmatpush.bf16.msra.mxu0 %v713
    %727 = vmatpush.bf16.msra.mxu0 %v712
    %728 = vmatpush.bf16.msra.mxu0 %v711
    %729 = vmatpush.bf16.msra.mxu0 %v710
    %730 = vmatpush.bf16.msra.mxu0 %v709
    %731 = vmatpush.bf16.msra.mxu0 %v708
    %732 = vmatmul.bf16.gmra.mxu0 %v655
    %v733 = vpop.f32.mrf.mxu0
    %v734 = vadd.f32 %v674, %v733
    %v735 = vpop.f32.mrf.mxu0
    %v736 = vadd.f32 %v674, %v735
    %737 = vdwg.mxu0
    %vm738 = vcmp.gt.f32.partialorder %v734, 0.0
    %vm739 = vcmp.gt.f32.partialorder %v736, 0.0
    %v740 = vmul.f32 %v734, 0.01
    %v741 = vmul.f32 %v736, 0.01
    %v742 = vsel %vm738, %v734, %v740
    %v743 = vsel %vm739, %v736, %v741
    %v744 = vpack.c.bf16 %v743, %v742
    %v745 = vld [vmem:[%s7] sm:$0xf]
    %v746 = vld [vmem:[%s7 + $0x4] sm:$0xf]
    %v747 = vld [vmem:[%s7 + $0x8] sm:$0xf]
    %v748 = vld [vmem:[%s7 + $0xc] sm:$0xf]
    %v749 = vld [vmem:[%s7 + $0x10] sm:$0xf]
    %v750 = vld [vmem:[%s7 + $0x14] sm:$0xf]
    %v751 = vld [vmem:[%s7 + $0x18] sm:$0xf]
    %v752 = vld [vmem:[%s7 + $0x1c] sm:$0xf]
    %v753 = vld [vmem:[#allocation8] sm:$0x1]
    %v755 = vperm.slane %v753, 0
    %v765 = vunpack.c.l.b16 %v745
    %v766 = vunpack.c.l.b16 %v746
    %v767 = vunpack.c.l.b16 %v747
    %v768 = vunpack.c.l.b16 %v748
    %v769 = vunpack.c.l.b16 %v749
    %v770 = vunpack.c.l.b16 %v750
    %v771 = vunpack.c.l.b16 %v751
    %v772 = vunpack.c.l.b16 %v752
    %v773 = vpack.c.b16 %v766, %v765
    %v774 = vpack.c.b16 %v768, %v767
    %v775 = vpack.c.b16 %v770, %v769
    %v776 = vpack.c.b16 %v772, %v771
    %vm781 = vcmask 523264
    %v783 = vsel %vm781, %v744, 0
    %785 = vmatpush.bf16.msra.mxu0 0
    %786 = vmatpush.bf16.msra.mxu0 0
    %787 = vmatpush.bf16.msra.mxu0 0
    %788 = vmatpush.bf16.msra.mxu0 0
    %789 = vmatpush.bf16.msra.mxu0 %v776
    %790 = vmatpush.bf16.msra.mxu0 %v775
    %791 = vmatpush.bf16.msra.mxu0 %v774
    %792 = vmatpush.bf16.msra.mxu0 %v773
    %793 = vmatmul.bf16.gmra.mxu0 %v783
    %v794 = vpop.f32.mrf.mxu0
    %v795 = vadd.f32 %v755, %v794
    %v796 = vpop.f32.mrf.mxu0
    %v797 = vadd.f32 %v755, %v796
    %798 = vdwg.mxu0
    %vm799 = vcmp.gt.f32.partialorder %v795, 0.0
    %vm800 = vcmp.gt.f32.partialorder %v797, 0.0
    %v801 = vmul.f32 %v795, 0.01
    %v802 = vmul.f32 %v797, 0.01
    %v803 = vsel %vm799, %v795, %v801
    %v804 = vsel %vm800, %v797, %v802
    %v805 = vpack.c.bf16 %v804, %v803
    %v806 = vld [vmem:[%s9] sm:$0xf]
    %v807 = vld [vmem:[%s9 + $0x4] sm:$0xf]
    %v808 = vld [vmem:[%s9 + $0x8] sm:$0xf]
    %v809 = vld [vmem:[%s9 + $0xc] sm:$0xf]
    %v810 = vld [vmem:[%s9 + $0x10] sm:$0xf]
    %v811 = vld [vmem:[%s9 + $0x14] sm:$0xf]
    %v812 = vld [vmem:[%s9 + $0x18] sm:$0xf]
    %v813 = vld [vmem:[%s9 + $0x1c] sm:$0xf]
    %v814 = vld [vmem:[%s9 + $0x20] sm:$0xf]
    %v815 = vld [vmem:[%s9 + $0x24] sm:$0xf]
    %v816 = vld [vmem:[%s9 + $0x28] sm:$0xf]
    %v817 = vld [vmem:[%s9 + $0x2c] sm:$0xf]
    %v818 = vld [vmem:[%s9 + $0x30] sm:$0xf]
    %v819 = vld [vmem:[%s9 + $0x34] sm:$0xf]
    %v820 = vld [vmem:[%s9 + $0x38] sm:$0xf]
    %v821 = vld [vmem:[%s9 + $0x3c] sm:$0xf]
    %v822 = vld [vmem:[#allocation10] sm:$0x1]
    %v824 = vperm.slane %v822, 0
    %v842 = vunpack.c.l.b16 %v806
    %v843 = vunpack.c.l.b16 %v807
    %v844 = vunpack.c.l.b16 %v808
    %v845 = vunpack.c.l.b16 %v809
    %v846 = vunpack.c.l.b16 %v810
    %v847 = vunpack.c.l.b16 %v811
    %v848 = vunpack.c.l.b16 %v812
    %v849 = vunpack.c.l.b16 %v813
    %v850 = vunpack.c.l.b16 %v814
    %v851 = vunpack.c.l.b16 %v815
    %v852 = vunpack.c.l.b16 %v816
    %v853 = vunpack.c.l.b16 %v817
    %v854 = vunpack.c.l.b16 %v818
    %v855 = vunpack.c.l.b16 %v819
    %v856 = vunpack.c.l.b16 %v820
    %v857 = vunpack.c.l.b16 %v821
    %v858 = vpack.c.b16 %v843, %v842
    %v859 = vpack.c.b16 %v845, %v844
    %v860 = vpack.c.b16 %v847, %v846
    %v861 = vpack.c.b16 %v849, %v848
    %v862 = vpack.c.b16 %v851, %v850
    %v863 = vpack.c.b16 %v853, %v852
    %v864 = vpack.c.b16 %v855, %v854
    %v865 = vpack.c.b16 %v857, %v856
    %874 = vmatpush.bf16.msra.mxu0 %v865
    %875 = vmatpush.bf16.msra.mxu0 %v864
    %876 = vmatpush.bf16.msra.mxu0 %v863
    %877 = vmatpush.bf16.msra.mxu0 %v862
    %878 = vmatpush.bf16.msra.mxu0 %v861
    %879 = vmatpush.bf16.msra.mxu0 %v860
    %880 = vmatpush.bf16.msra.mxu0 %v859
    %881 = vmatpush.bf16.msra.mxu0 %v858
    %882 = vmatmul.bf16.gmra.mxu0 %v805
    %v883 = vpop.f32.mrf.mxu0
    %v884 = vadd.f32 %v824, %v883
    %v885 = vpop.f32.mrf.mxu0
    %v886 = vadd.f32 %v824, %v885
    %887 = vdwg.mxu0
    %vm888 = vcmp.gt.f32.partialorder %v884, 0.0
    %vm889 = vcmp.gt.f32.partialorder %v886, 0.0
    %v890 = vmul.f32 %v884, 0.01
    %v891 = vmul.f32 %v886, 0.01
    %v892 = vsel %vm888, %v884, %v890
    %v893 = vsel %vm889, %v886, %v891
    %v894 = vld [vmem:[#allocation11] sm:$0x1]
    %v896 = vperm.slane %v894, 0
    %v898 = vmul.f32 %v892, %v896
    %v899 = vmul.f32 %v893, %v896
    %vm900 = vcmask 261120
    %v901 = vsel %vm900, %v898, 0.0
    %902 = vadd.xlane.f32.xlu0 %v901
    %v903 = vpop.xlane.xlu0 %902
    %v904 = vsel %vm900, %v899, 0.0
    %905 = vadd.xlane.f32.xlu0 %v904
    %v906 = vpop.xlane.xlu0 %905
    %v907 = vld [vmem:[#allocation2] sm:$0x1]
    %v909 = vperm.slane %v907, 0
    %v911 = vadd.f32 %v903, %v909
    %v912 = vadd.f32 %v906, %v909
    %v913 = vxor.u32 %v911, 2147483648
    %v914 = vxor.u32 %v912, 2147483648
    %v915 = vmul.f32 %v913, 1.442695
    %v916 = vpow.pop %v915
    %v917 = vmul.f32 %v914, 1.442695
    %v918 = vpow.pop %v917
    %v919 = vadd.f32 %v916, 1.0
    %v920 = vadd.f32 %v918, 1.0
    %v921 = vrcp.pop %v919
    %v922 = vmul.f32 %v919, %v921
    %v923 = vsub.f32 1.0, %v922
    %v924 = vmul.f32 %v921, %v923
    %v925 = vadd.f32 %v921, %v924
    %vm926 = vweird.f32 %v919
    %vm927 = vweird.f32 %v921
    %vm928 = vmor %vm926, %vm927
    %v929 = vsel %vm928, %v921, %v925
    %v930 = vand.u32 2147483647, %v919
    %vm931 = vcmp.eq.f32.partialorder %v930, 8.507059e+37
    %v932 = vand.u32 %v919, 2147483648
    %v933 = vor.u32 1.1754944e-38, %v932
    %v934 = vsel %vm931, %v933, %v929
    %v935 = vmul.f32 1.0, %v934
    %v936 = vrcp.pop %v920
    %v937 = vmul.f32 %v920, %v936
    %v938 = vsub.f32 1.0, %v937
    %v939 = vmul.f32 %v936, %v938
    %v940 = vadd.f32 %v936, %v939
    %vm941 = vweird.f32 %v920
    %vm942 = vweird.f32 %v936
    %vm943 = vmor %vm941, %vm942
    %v944 = vsel %vm943, %v936, %v940
    %v945 = vand.u32 2147483647, %v920
    %vm946 = vcmp.eq.f32.partialorder %v945, 8.507059e+37
    %v947 = vand.u32 %v920, 2147483648
    %v948 = vor.u32 1.1754944e-38, %v947
    %v949 = vsel %vm946, %v948, %v944
    %v950 = vmul.f32 1.0, %v949
    %v951 = vlaneseq
    %v952 = vand.u32 %v951, 127
    %vm953 = vcmp.lt.s32.totalorder %v952, 4
    %v954 = vsel %vm953, %v795, 0.0
    %v955 = vsel %vm953, %v797, 0.0
    %vm956 = vcmp.eq.s32.totalorder %v952, 4
    %958 = vset.pattern.permute.xlu0 0
    %959 = vperm.xlu0 %958, %v935
    %v960 = vpop.permute.xlu0 %959
    %963 = vset.pattern.permute.xlu0 0
    %964 = vperm.xlu0 %963, %v950
    %v965 = vpop.permute.xlu0 %964
    %v967 = vsel %vm956, %v960, %v954
    %v968 = vsel %vm956, %v965, %v955
    %v969 = vpack.c.bf16 %v967, %v967
    %v970 = vpack.c.bf16 %v968, %v968
    %971 = vst [vmem:[#allocation13] sm:$0xf] %v969
    %972 = vst [vmem:[#allocation13 + $0x4] sm:$0xf] %v970
    // Predicated region
    $region78: #{dann_forward.1} parent=1 // pred_check
      _
    $region79: #{dann_forward.1} parent=1 // pred_check_branch
      %974 = sbr.rel (0) target = $region81
    $region80: #{dann_forward.1} parent=1 // pred_region
      // Predicated region
      $region82: #{dann_forward.1} parent=80 // pred_check
        _
      $region83: #{dann_forward.1} parent=80 // pred_check_branch
        %976 = sbr.rel (0) target = $region85
      $region84: #{dann_forward.1} parent=80 // pred_region
        // Predicated region
        $region86: #{dann_forward.1} parent=84 // pred_check
          _
        $region87: #{dann_forward.1} parent=84 // pred_check_branch
          %978 = sbr.rel target = $region89
        $region88: #{dann_forward.1} parent=84 // pred_region
          // Predicated region
          $region101: #{dann_forward.1} parent=88 // pred_check
            _
          $region102: #{dann_forward.1} parent=88 // pred_check_branch
            %994 = sbr.rel (0) target = $region104
          $region103: #{dann_forward.1} parent=88 // pred_region
            %s996 = ssub.s32 16, 1
            loop: start=0, step=1, limit=1
            $region105: #{dann_forward.1} parent=103 // loop_pre_header
              _
            $region106: #{dann_forward.1} parent=103 // loop_header
              %s998 = sphi 0, %s1002
              %p999 = scmp.ge.s32.totalorder %s998, 1
              %s1003 = sphi [#allocation13], [#allocation13]
              %s1004 = sphi %s13, %s13
            $region107: #{dann_forward.1} parent=103 // loop_header_branch
              %1001 = sbr.rel (%p999) target = $region111
            $region108: #{dann_forward.1} parent=103 // loop_body
              %v1005 = vld [vmem:[%s1003] sm:%s996]
              %1006 = vst [vmem:[%s1004] sm:%s996] %v1005
            $region109: #{dann_forward.1} parent=103 // loop_footer
              %s1002 = sadd.s32 1, %s998
            $region110: #{dann_forward.1} parent=103 // loop_footer_branch
              %997 = sbr.rel target = $region106
            $region111: #{dann_forward.1} parent=103 // loop_exit
              _
          $region104: #{dann_forward.1} parent=88 // pred_fallthru
            _
        $region89: #{dann_forward.1} parent=84 // pred_fallthru
          _
        // Predicated region
        $region90: #{dann_forward.1} parent=84 // pred_check
          _
        $region91: #{dann_forward.1} parent=84 // pred_check_branch
          %980 = sbr.rel (0) target = $region93
        $region92: #{dann_forward.1} parent=84 // pred_region
          %s982 = ssub.s32 16, 1
          loop: start=0, step=1, limit=1
          $region94: #{dann_forward.1} parent=92 // loop_pre_header
            _
          $region95: #{dann_forward.1} parent=92 // loop_header
            %s984 = sphi 0, %s988
            %p985 = scmp.ge.s32.totalorder %s984, 1
            %s989 = sphi [#allocation13], [#allocation13]
            %s990 = sphi %s13, %s13
          $region96: #{dann_forward.1} parent=92 // loop_header_branch
            %987 = sbr.rel (%p985) target = $region100
          $region97: #{dann_forward.1} parent=92 // loop_body
            %v991 = vld [vmem:[%s989] sm:%s982]
            %992 = vst [vmem:[%s990] sm:%s982] %v991
          $region98: #{dann_forward.1} parent=92 // loop_footer
            %s988 = sadd.s32 1, %s984
          $region99: #{dann_forward.1} parent=92 // loop_footer_branch
            %983 = sbr.rel target = $region95
          $region100: #{dann_forward.1} parent=92 // loop_exit
            _
        $region93: #{dann_forward.1} parent=84 // pred_fallthru
          _
      $region85: #{dann_forward.1} parent=80 // pred_fallthru
        _
      %1007 = vnop
    $region81: #{dann_forward.1} parent=1 // pred_fallthru
      _
    // Predicated region
    $region112: #{dann_forward.1} parent=1 // pred_check
      _
    $region113: #{dann_forward.1} parent=1 // pred_check_branch
      %1009 = sbr.rel (0) target = $region115
    $region114: #{dann_forward.1} parent=1 // pred_region
      _
    $region115: #{dann_forward.1} parent=1 // pred_fallthru
      _
    %1010 = vsyncpa [#allocation4], 1
    %1011 = vsyncpa [#allocation6], 1
    %1012 = vsyncpa [#allocation9], 1
    %1013 = vsyncpa [#allocation12], 1

</llo_original>
